<compile_context>
chip_gen: v7x
topology: tpu7x:2x2x1
jax: 0.10.0
libtpu: 0.0.40
codegen_flags: <defaults>
</compile_context>

<pallas_src>
import math
import numpy as np
import jax
import jax.numpy as jnp
from jax.experimental import pallas as pl
from jax.experimental.pallas import tpu as pltpu


def _round_up(x, m):
    return ((x + m - 1) // m) * m


# ---------------------------------------------------------------------------
# Fused single-K-step matmul + bias + (optional ReLU)
#   y = act(x @ w + b); bf16 operands, f32 MXU accumulation, no K grid axis,
#   no accumulator scratch, no K padding (full-K panels resident in VMEM).
# ---------------------------------------------------------------------------
def matmul_bias_act(x, w, b, *, relu, out_dtype=jnp.bfloat16):
    M, K = x.shape
    K2, N = w.shape
    assert K == K2

    xb = x.astype(jnp.bfloat16)
    wb = w.astype(jnp.bfloat16)
    b2 = b.astype(jnp.float32).reshape(1, N)

    # M/N edge blocks are partial (reads bring stale data, writes beyond M/N are
    # discarded) -> no padding round trips.  K is taken whole (== array dim).
    TM = min(256, _round_up(M, 8))
    TN = N if N <= 512 else 512
    grid = (pl.cdiv(M, TM), pl.cdiv(N, TN))

    def kernel(x_ref, w_ref, b_ref, o_ref):
        acc = jnp.dot(x_ref[...], w_ref[...], preferred_element_type=jnp.float32)
        acc = acc + b_ref[...]
        if relu:
            acc = jnp.maximum(acc, 0.0)
        o_ref[...] = acc.astype(o_ref.dtype)

    cost = pl.CostEstimate(
        flops=2 * M * N * K,
        transcendentals=0,
        bytes_accessed=M * K * 2 + K * N * 2 + N * 4
        + M * N * jnp.dtype(out_dtype).itemsize,
    )

    return pl.pallas_call(
        kernel,
        out_shape=jax.ShapeDtypeStruct((M, N), out_dtype),
        grid_spec=pltpu.PrefetchScalarGridSpec(
            num_scalar_prefetch=0,
            grid=grid,
            in_specs=[
                pl.BlockSpec((TM, K), lambda i, j: (i, 0)),
                pl.BlockSpec((K, TN), lambda i, j: (0, j)),
                pl.BlockSpec((1, TN), lambda i, j: (0, j)),
            ],
            out_specs=pl.BlockSpec((TM, TN), lambda i, j: (i, j)),
        ),
        compiler_params=pltpu.CompilerParams(
            dimension_semantics=("parallel", "parallel")
        ),
        cost_estimate=cost,
    )(xb, wb, b2)


# ---------------------------------------------------------------------------
# Conv2d (+ReLU) via NHWC im2col + fused Pallas matmul (no layout transposes)
# ---------------------------------------------------------------------------
def conv2d_relu(x, w, b, *, stride, pad, relu=True):
    """x: (B, H, W, Cin) NHWC, w: (Cout, Cin, KH, KW) torch layout, b: (Cout,)."""
    B, H, W, Cin = x.shape
    Cout, _, KH, KW = w.shape
    xpd = jnp.pad(x.astype(jnp.bfloat16), ((0, 0), (pad, pad), (pad, pad), (0, 0)))
    Hp, Wp = H + 2 * pad, W + 2 * pad
    Ho = (Hp - KH) // stride + 1
    Wo = (Wp - KW) // stride + 1

    if Cin == 1:
        # Special case: drop the trailing Cin=1 axis and stack the window axis
        # last so the patch matrix is built lane-dense from 2-D image slices.
        x2 = xpd[..., 0]                                   # (B, Hp, Wp)
        cols = []
        for kh in range(KH):
            for kw in range(KW):
                cols.append(
                    x2[:, kh: kh + stride * (Ho - 1) + 1: stride,
                          kw: kw + stride * (Wo - 1) + 1: stride]
                )
        patches = jnp.stack(cols, axis=-1).reshape(B * Ho * Wo, KH * KW)
    else:
        cols = []
        for kh in range(KH):
            for kw in range(KW):
                cols.append(
                    xpd[:, kh: kh + stride * (Ho - 1) + 1: stride,
                           kw: kw + stride * (Wo - 1) + 1: stride, :]
                )
        # (B, Ho, Wo, KH*KW, Cin) -> contiguous reshape, trailing K axis lane-dense.
        patches = jnp.stack(cols, axis=3).reshape(B * Ho * Wo, KH * KW * Cin)

    # weight rows ordered (kh, kw, cin) to match the patch K ordering.
    wmat = w.transpose(2, 3, 1, 0).reshape(KH * KW * Cin, Cout)

    y = matmul_bias_act(patches, wmat, b, relu=relu, out_dtype=jnp.bfloat16)
    return y.reshape(B, Ho, Wo, Cout)


# ---------------------------------------------------------------------------
# MaxPool2d(kernel=3, stride=2) — one Pallas launch, 9-way elementwise max.
# Inputs/output are reshaped (free, row-major) to a lane-dense (*, 128) view
# when possible so stores are full-lane vst rather than masked partials.
# ---------------------------------------------------------------------------
def maxpool2d_3x3_s2(x):
    B, H, W, C = x.shape
    Ho = (H - 3) // 2 + 1
    Wo = (W - 3) // 2 + 1
    L = B * Ho * Wo

    slices = []
    for kh in range(3):
        for kw in range(3):
            slices.append(
                x[:, kh: kh + 2 * (Ho - 1) + 1: 2,
                     kw: kw + 2 * (Wo - 1) + 1: 2, :].reshape(L, C)
            )

    tot = L * C
    if tot % 128 == 0:
        shaped = [s.reshape(tot // 128, 128) for s in slices]
        out2d = (tot // 128, 128)
    else:
        shaped = slices
        out2d = (L, C)

    def kernel(*refs):
        o_ref = refs[-1]
        m = refs[0][...]
        for r in refs[1:-1]:
            m = jnp.maximum(m, r[...])
        o_ref[...] = m

    out = pl.pallas_call(
        kernel, out_shape=jax.ShapeDtypeStruct(out2d, x.dtype)
    )(*shaped)
    return out.reshape(B, Ho, Wo, C)


# ---------------------------------------------------------------------------
# AdaptiveAvgPool2d((6, 6)) — plain JAX glue (tiny static-index averaging, f32)
# ---------------------------------------------------------------------------
def adaptive_avg_pool_6x6(x):
    B, H, W, C = x.shape
    x32 = x.astype(jnp.float32)

    def bounds(size, out):
        return [((i * size) // out, -((-(i + 1) * size) // out)) for i in range(out)]

    hb, wb = bounds(H, 6), bounds(W, 6)
    rows = []
    for (h0, h1) in hb:
        cells = [jnp.mean(x32[:, h0:h1, w0:w1, :], axis=(1, 2)) for (w0, w1) in wb]
        rows.append(jnp.stack(cells, axis=1))       # (B, 6, C)
    return jnp.stack(rows, axis=1)                  # (B, 6, 6, C) f32


# ---------------------------------------------------------------------------
# Fused classifier tail: fc1 -> ReLU -> fc2 -> ReLU -> concatenated-head
# Linear -> masked multi-segment log-softmax, all in ONE Pallas kernel with
# every weight resident in VMEM.  (Dropout = identity, eval mode.)
# ---------------------------------------------------------------------------
def fused_classifier_tail(h, params, nums_classes):
    B, K1 = h.shape
    Hd = params["fc1_w"].shape[0]                   # size_hidden
    offsets = np.cumsum([0] + list(nums_classes))
    Ntot = int(offsets[-1])

    w1 = params["fc1_w"].T.astype(jnp.bfloat16)     # (K1, Hd)
    b1 = params["fc1_b"].astype(jnp.float32).reshape(1, Hd)
    w2 = params["fc2_w"].T.astype(jnp.bfloat16)     # (Hd, Hd)
    b2 = params["fc2_b"].astype(jnp.float32).reshape(1, Hd)
    wh = jnp.concatenate(
        [params[f"head{i}_w"] for i in range(len(nums_classes))], axis=0
    ).T.astype(jnp.bfloat16)                        # (Hd, Ntot)
    bh = jnp.concatenate(
        [params[f"head{i}_b"] for i in range(len(nums_classes))], axis=0
    ).astype(jnp.float32).reshape(1, Ntot)

    def kernel(h_ref, w1_ref, b1_ref, w2_ref, b2_ref, wh_ref, bh_ref, o_ref):
        h1 = jnp.dot(h_ref[...], w1_ref[...], preferred_element_type=jnp.float32)
        h1 = jnp.maximum(h1 + b1_ref[...], 0.0).astype(jnp.bfloat16)
        h2 = jnp.dot(h1, w2_ref[...], preferred_element_type=jnp.float32)
        h2 = jnp.maximum(h2 + b2_ref[...], 0.0).astype(jnp.bfloat16)
        logits = jnp.dot(h2, wh_ref[...], preferred_element_type=jnp.float32)
        logits = logits + bh_ref[...]
        # masked per-segment log-softmax over the concatenated head logits
        col = jax.lax.broadcasted_iota(jnp.int32, logits.shape, 1)
        out = jnp.zeros_like(logits)
        for i, nc in enumerate(nums_classes):
            off = int(offsets[i])
            mask = (col >= off) & (col < off + nc)
            xm = jnp.where(mask, logits, -1e30)
            m = jnp.max(xm, axis=-1, keepdims=True)
            e = jnp.where(mask, jnp.exp(logits - m), 0.0)
            s = jnp.sum(e, axis=-1, keepdims=True)
            out = jnp.where(mask, logits - m - jnp.log(s), out)
        o_ref[...] = out

    logp = pl.pallas_call(
        kernel, out_shape=jax.ShapeDtypeStruct((B, Ntot), jnp.float32)
    )(h.astype(jnp.bfloat16), w1, b1, w2, b2, wh, bh)

    return tuple(
        logp[:, int(offsets[i]): int(offsets[i]) + nc]
        for i, nc in enumerate(nums_classes)
    )


# ---------------------------------------------------------------------------
# Parameter init (deterministic, fan-in scaled normal)
# ---------------------------------------------------------------------------
def init_params(key, nums_classes, size_hidden):
    params = {}

    def nxt():
        nonlocal key
        key, sub = jax.random.split(key)
        return sub

    def conv_p(name, cout, cin, k):
        fan_in = cin * k * k
        params[name + "_w"] = (
            jax.random.normal(nxt(), (cout, cin, k, k), jnp.float32) / math.sqrt(fan_in)
        )
        params[name + "_b"] = jax.random.normal(nxt(), (cout,), jnp.float32) * 0.01

    def lin_p(name, cout, cin):
        params[name + "_w"] = (
            jax.random.normal(nxt(), (cout, cin), jnp.float32) / math.sqrt(cin)
        )
        params[name + "_b"] = jax.random.normal(nxt(), (cout,), jnp.float32) * 0.01

    conv_p("conv1", 64, 1, 11)
    conv_p("conv2", 192, 64, 5)
    conv_p("conv3", 384, 192, 3)
    conv_p("conv4", 256, 384, 3)
    conv_p("conv5", 256, 256, 3)
    lin_p("fc1", size_hidden, 256 * 6 * 6)
    lin_p("fc2", size_hidden, size_hidden)
    for i, nc in enumerate(nums_classes):
        lin_p(f"head{i}", nc, size_hidden)
    return params


# ---------------------------------------------------------------------------
# Full forward pass (mirrors SDMDAlexNet.forward, eval mode)
# ---------------------------------------------------------------------------
def sdmd_alexnet_forward(params, x_nchw, nums_classes):
    # NCHW input (torch convention) -> NHWC for the whole feature extractor.
    h = x_nchw.transpose(0, 2, 3, 1).astype(jnp.bfloat16)

    # features
    h = conv2d_relu(h, params["conv1_w"], params["conv1_b"], stride=4, pad=2)
    h = maxpool2d_3x3_s2(h)
    h = conv2d_relu(h, params["conv2_w"], params["conv2_b"], stride=1, pad=2)
    h = maxpool2d_3x3_s2(h)
    h = conv2d_relu(h, params["conv3_w"], params["conv3_b"], stride=1, pad=1)
    h = conv2d_relu(h, params["conv4_w"], params["conv4_b"], stride=1, pad=1)
    h = conv2d_relu(h, params["conv5_w"], params["conv5_b"], stride=1, pad=1)
    h = maxpool2d_3x3_s2(h)
    # avgpool (NHWC, f32) then flatten in torch's (C, H, W) order for fc1.
    h = adaptive_avg_pool_6x6(h)                                    # (B, 6, 6, C)
    B = h.shape[0]
    h = h.transpose(0, 3, 1, 2).reshape(B, -1).astype(jnp.bfloat16)  # (B, 256*6*6)
    # fused classifier tail: fc1/fc2/heads/log-softmax in ONE Pallas launch.
    return fused_classifier_tail(h, params, nums_classes)


if __name__ == "__main__":
    nums_classes = (3, 5)
    size_hidden = 64

    key = jax.random.PRNGKey(0)
    key, pkey, xkey = jax.random.split(key, 3)
    params = init_params(pkey, nums_classes, size_hidden)

    # quick correctness check of the fused matmul kernel vs a bf16 reference
    k1, k2, k3 = jax.random.split(key, 3)
    xa = jax.random.normal(k1, (100, 200), jnp.float32)
    wa = jax.random.normal(k2, (200, 192), jnp.float32)
    ba = jax.random.normal(k3, (192,), jnp.float32)
    got = matmul_bias_act(xa, wa, ba, relu=True, out_dtype=jnp.float32)
    ref = jnp.maximum(
        jnp.dot(
            xa.astype(jnp.bfloat16).astype(jnp.float32),
            wa.astype(jnp.bfloat16).astype(jnp.float32),
        )
        + ba,
        0.0,
    )
    np.testing.assert_allclose(np.asarray(got), np.asarray(ref), rtol=1e-2, atol=1e-2)

    # Smallest spatial size that survives the three stride-2 maxpools is 63.
    x = jax.random.normal(xkey, (2, 1, 63, 63), jnp.float32)

    fwd = jax.jit(lambda p, xx: sdmd_alexnet_forward(p, xx, nums_classes))
    outs = jax.block_until_ready(fwd(params, x))

    # sanity: log-softmax rows exponentiate-sum to 1, shapes match num_classes
    for out, nc in zip(outs, nums_classes):
        assert out.shape == (2, nc)
        np.testing.assert_allclose(
            np.exp(np.asarray(out, dtype=np.float32)).sum(axis=-1),
            np.ones(2),
            rtol=1e-4,
        )

    print("KERNEL_OK")
</pallas_src>

<mosaic_0001>
module attributes {stable_mosaic.version = 11 : i64} {
  func.func @kernel(%arg0: i32, %arg1: i32, %arg2: memref<104x200xbf16, #tpu.memory_space<vmem>>, %arg3: memref<200x192xbf16, #tpu.memory_space<vmem>>, %arg4: memref<1x192xf32, #tpu.memory_space<vmem>>, %arg5: memref<104x192xf32, #tpu.memory_space<vmem>>) attributes {dimension_semantics = [#tpu.dimension_semantics<parallel>, #tpu.dimension_semantics<parallel>], iteration_bounds = array<i64: 1, 1>, scalar_prefetch = 0 : i64, scratch_operands = 0 : i64, tpu.core_type = #tpu.core_type<tc>, window_params = [{transform_indices = @transform_0, window_bounds = array<i64: 104, 200>}, {transform_indices = @transform_1, window_bounds = array<i64: 200, 192>}, {transform_indices = @transform_2, window_bounds = array<i64: 1, 192>}, {transform_indices = @transform_3, window_bounds = array<i64: 104, 192>}]} {
    %c0 = arith.constant 0 : index
    %c0_0 = arith.constant 0 : index
    %0 = vector.load %arg2[%c0, %c0_0] : memref<104x200xbf16, #tpu.memory_space<vmem>>, vector<104x200xbf16>
    %c0_1 = arith.constant 0 : index
    %c0_2 = arith.constant 0 : index
    %1 = vector.load %arg3[%c0_1, %c0_2] : memref<200x192xbf16, #tpu.memory_space<vmem>>, vector<200x192xbf16>
    %cst = arith.constant dense<0.000000e+00> : vector<104x192xf32>
    %2 = tpu.matmul %0, %1, %cst {dimension_numbers = #tpu.dot_dimension_numbers<[1], [0], [0], [1], [0, 0, 1, 1], [], []>} : vector<104x200xbf16>, vector<200x192xbf16>, vector<104x192xf32> -> vector<104x192xf32>
    %c0_3 = arith.constant 0 : index
    %c0_4 = arith.constant 0 : index
    %3 = vector.load %arg4[%c0_3, %c0_4] : memref<1x192xf32, #tpu.memory_space<vmem>>, vector<1x192xf32>
    %4 = vector.broadcast %3 : vector<1x192xf32> to vector<104x192xf32>
    %5 = arith.addf %2, %4 : vector<104x192xf32>
    %cst_5 = arith.constant 0.000000e+00 : f32
    %6 = vector.broadcast %cst_5 : f32 to vector<104x192xf32>
    %7 = arith.maximumf %5, %6 : vector<104x192xf32>
    %c0_6 = arith.constant 0 : index
    %c0_7 = arith.constant 0 : index
    %8 = vector.load %arg5[%c0_6, %c0_7] : memref<104x192xf32, #tpu.memory_space<vmem>>, vector<104x192xf32>
    tpu.vector_store %arg5[%c0_6, %c0_7], %7 {strides = array<i32>} : memref<104x192xf32, #tpu.memory_space<vmem>>, vector<104x192xf32>,
    return
  }
  func.func @transform_0(%arg0: i32, %arg1: i32) -> (i32, i32) {
    %c0_i32 = arith.constant 0 : i32
    %c0_i32_0 = arith.constant 0 : i32
    return %arg0, %c0_i32 : i32, i32
  }
  func.func @transform_1(%arg0: i32, %arg1: i32) -> (i32, i32) {
    %c0_i32 = arith.constant 0 : i32
    %c0_i32_0 = arith.constant 0 : i32
    return %c0_i32, %arg1 : i32, i32
  }
  func.func @transform_2(%arg0: i32, %arg1: i32) -> (i32, i32) {
    %c0_i32 = arith.constant 0 : i32
    %c0_i32_0 = arith.constant 0 : i32
    return %c0_i32, %arg1 : i32, i32
  }
  func.func @transform_3(%arg0: i32, %arg1: i32) -> (i32, i32) {
    %c0_i32 = arith.constant 0 : i32
    return %arg0, %arg1 : i32, i32
  }
}

</mosaic_0001>

<llo_original>
// kernel: tpu_custom_call.1
$region0: #{tpu_custom_call.1}
  #allocation0 [shape = 'u32[]', space=smem, size = 0x4, offset = 0x4, fixed_abs, tag = 'smem constant byte address 0x4 - core index']
  #allocation1 [shape = 'u32[144,128]{1,0:T(1,128)}', space=vmem, size = 0x12000, scoped, tag = 'internal scratch']
  %s0 = inlined_call_operand.vmem [shape: bf16[100,200], index: 0, kind: input, shape index: {}]
  %s1 = inlined_call_operand.vmem [shape: bf16[200,192], index: 1, kind: input, shape index: {}]
  %s2 = inlined_call_operand.vmem [shape: f32[1,192], index: 2, kind: input, shape index: {}]
  %s3 = inlined_call_operand.vmem [shape: f32[100,192], index: 3, kind: output, shape index: {}]
  %s4 = sld [smem:[#allocation0]]
  $region22: #{tpu_custom_call.1} parent=0
    _
  %s6 = ssub.s32 1, %s4
  %s7 = scalar_select 0, %s6, %s4
  // Predicated region
  $region2: #{tpu_custom_call.1} parent=0 // pred_check
    _
  $region3: #{tpu_custom_call.1} parent=0 // pred_check_branch
    %9 = sbr.rel (0) target = $region5
  $region4: #{tpu_custom_call.1} parent=0 // pred_region
    _
  $region5: #{tpu_custom_call.1} parent=0 // pred_fallthru
    _
  // Predicated region
  $region6: #{tpu_custom_call.1} parent=0 // pred_check
    _
  $region7: #{tpu_custom_call.1} parent=0 // pred_check_branch
    %11 = sbr.rel (0) target = $region9
  $region8: #{tpu_custom_call.1} parent=0 // pred_region
    _
  $region9: #{tpu_custom_call.1} parent=0 // pred_fallthru
    _
  // Predicated region
  $region10: #{tpu_custom_call.1} parent=0 // pred_check
    _
  $region11: #{tpu_custom_call.1} parent=0 // pred_check_branch
    %13 = sbr.rel (0) target = $region13
  $region12: #{tpu_custom_call.1} parent=0 // pred_region
    _
  $region13: #{tpu_custom_call.1} parent=0 // pred_fallthru
    _
  %v15 = vld [vmem:[%s0] sm:$0xff]
  %v16 = vld [vmem:[%s0 + $0x8] sm:$0xff]
  %v17 = vld [vmem:[%s0 + $0x10] sm:$0xff]
  %v18 = vld [vmem:[%s0 + $0x18] sm:$0xff]
  %v19 = vld [vmem:[%s0 + $0x20] sm:$0xff]
  %v20 = vld [vmem:[%s0 + $0x28] sm:$0xff]
  %v21 = vld [vmem:[%s0 + $0x30] sm:$0xff]
  %v22 = vld [vmem:[%s0 + $0x38] sm:$0xff]
  %v23 = vld [vmem:[%s0 + $0x40] sm:$0xff]
  %v24 = vld [vmem:[%s0 + $0x48] sm:$0xff]
  %v25 = vld [vmem:[%s0 + $0x50] sm:$0xff]
  %v26 = vld [vmem:[%s0 + $0x58] sm:$0xff]
  %v27 = vld [vmem:[%s0 + $0x60] sm:$0xff]
  %v28 = vld [vmem:[%s1] sm:$0xff]
  %v29 = vld [vmem:[%s1 + $0x8] sm:$0xff]
  %v30 = vld [vmem:[%s1 + $0x10] sm:$0xff]
  %v31 = vld [vmem:[%s1 + $0x18] sm:$0xff]
  %v32 = vld [vmem:[%s1 + $0x20] sm:$0xff]
  %v33 = vld [vmem:[%s1 + $0x28] sm:$0xff]
  %v34 = vld [vmem:[%s1 + $0x30] sm:$0xff]
  %v35 = vld [vmem:[%s1 + $0x38] sm:$0xff]
  %v36 = vld [vmem:[%s1 + $0x40] sm:$0xff]
  %v37 = vld [vmem:[%s1 + $0x48] sm:$0xff]
  %v38 = vld [vmem:[%s1 + $0x50] sm:$0xff]
  %v39 = vld [vmem:[%s1 + $0x58] sm:$0xff]
  %v40 = vld [vmem:[%s1 + $0x60] sm:$0xff]
  %v41 = vld [vmem:[%s1 + $0x68] sm:$0xff]
  %v42 = vld [vmem:[%s1 + $0x70] sm:$0xff]
  %v43 = vld [vmem:[%s1 + $0x78] sm:$0xff]
  %v44 = vld [vmem:[%s1 + $0x80] sm:$0xff]
  %v45 = vld [vmem:[%s1 + $0x88] sm:$0xff]
  %v46 = vld [vmem:[%s1 + $0x90] sm:$0xff]
  %v47 = vld [vmem:[%s1 + $0x98] sm:$0xff]
  %v48 = vld [vmem:[%s1 + $0xa0] sm:$0xff]
  %v49 = vld [vmem:[%s1 + $0xa8] sm:$0xff]
  %v50 = vld [vmem:[%s1 + $0xb0] sm:$0xff]
  %v51 = vld [vmem:[%s1 + $0xb8] sm:$0xff]
  %v52 = vld [vmem:[%s1 + $0xc0] sm:$0xff]
  %v53 = vld [vmem:[%s2] sm:$0x3]
  %v55 = vlaneseq
  %v56 = vshrl.u32 %v55, 7
  %v57 = vsub.s32 0, %v56
  %v58 = vrot.slane %v53, %v57
  %v59 = vlaneseq
  %v60 = vshrl.u32 %v59, 7
  %v61 = vsub.s32 1, %v60
  %v62 = vrot.slane %v53, %v61
  %v78 = vunpack.c.l.b16 %v15
  %v79 = vunpack.c.h.b16 %v15
  %v80 = vunpack.c.l.b16 %v16
  %v81 = vunpack.c.h.b16 %v16
  %v82 = vunpack.c.l.b16 %v17
  %v83 = vunpack.c.h.b16 %v17
  %v84 = vunpack.c.l.b16 %v18
  %v85 = vunpack.c.h.b16 %v18
  %v86 = vunpack.c.l.b16 %v19
  %v87 = vunpack.c.h.b16 %v19
  %v88 = vunpack.c.l.b16 %v20
  %v89 = vunpack.c.h.b16 %v20
  %v90 = vunpack.c.l.b16 %v21
  %v91 = vunpack.c.h.b16 %v21
  %v92 = vunpack.c.l.b16 %v22
  %v93 = vunpack.c.h.b16 %v22
  %v94 = vunpack.c.l.b16 %v23
  %v95 = vunpack.c.h.b16 %v23
  %v96 = vunpack.c.l.b16 %v24
  %v97 = vunpack.c.h.b16 %v24
  %v98 = vunpack.c.l.b16 %v25
  %v99 = vunpack.c.h.b16 %v25
  %v100 = vunpack.c.l.b16 %v26
  %v101 = vunpack.c.h.b16 %v26
  %v102 = vunpack.c.l.b16 %v27
  %v103 = vunpack.c.h.b16 %v27
  %v104 = vpack.c.b16 %v80, %v78
  %v105 = vpack.c.b16 %v81, %v79
  %v106 = vpack.c.b16 %v84, %v82
  %v107 = vpack.c.b16 %v85, %v83
  %v108 = vpack.c.b16 %v88, %v86
  %v109 = vpack.c.b16 %v89, %v87
  %v110 = vpack.c.b16 %v92, %v90
  %v111 = vpack.c.b16 %v93, %v91
  %v112 = vpack.c.b16 %v96, %v94
  %v113 = vpack.c.b16 %v97, %v95
  %v114 = vpack.c.b16 %v100, %v98
  %v115 = vpack.c.b16 %v101, %v99
  %v116 = vpack.c.b16 %v102, %v102
  %v117 = vpack.c.b16 %v103, %v103
  %v150 = vunpack.c.l.b16 %v28
  %v151 = vunpack.c.h.b16 %v28
  %v152 = vunpack.c.l.b16 %v29
  %v153 = vunpack.c.h.b16 %v29
  %v154 = vunpack.c.l.b16 %v30
  %v155 = vunpack.c.h.b16 %v30
  %v156 = vunpack.c.l.b16 %v31
  %v157 = vunpack.c.h.b16 %v31
  %v158 = vunpack.c.l.b16 %v32
  %v159 = vunpack.c.h.b16 %v32
  %v160 = vunpack.c.l.b16 %v33
  %v161 = vunpack.c.h.b16 %v33
  %v162 = vunpack.c.l.b16 %v34
  %v163 = vunpack.c.h.b16 %v34
  %v164 = vunpack.c.l.b16 %v35
  %v165 = vunpack.c.h.b16 %v35
  %v166 = vunpack.c.l.b16 %v36
  %v167 = vunpack.c.h.b16 %v36
  %v168 = vunpack.c.l.b16 %v37
  %v169 = vunpack.c.h.b16 %v37
  %v170 = vunpack.c.l.b16 %v38
  %v171 = vunpack.c.h.b16 %v38
  %v172 = vunpack.c.l.b16 %v39
  %v173 = vunpack.c.h.b16 %v39
  %v174 = vunpack.c.l.b16 %v40
  %v175 = vunpack.c.h.b16 %v40
  %v176 = vunpack.c.l.b16 %v41
  %v177 = vunpack.c.h.b16 %v41
  %v178 = vunpack.c.l.b16 %v42
  %v179 = vunpack.c.h.b16 %v42
  %v180 = vunpack.c.l.b16 %v43
  %v181 = vunpack.c.h.b16 %v43
  %v182 = vunpack.c.l.b16 %v44
  %v183 = vunpack.c.h.b16 %v44
  %v184 = vunpack.c.l.b16 %v45
  %v185 = vunpack.c.h.b16 %v45
  %v186 = vunpack.c.l.b16 %v46
  %v187 = vunpack.c.h.b16 %v46
  %v188 = vunpack.c.l.b16 %v47
  %v189 = vunpack.c.h.b16 %v47
  %v190 = vunpack.c.l.b16 %v48
  %v191 = vunpack.c.h.b16 %v48
  %v192 = vunpack.c.l.b16 %v49
  %v193 = vunpack.c.h.b16 %v49
  %v194 = vunpack.c.l.b16 %v50
  %v195 = vunpack.c.h.b16 %v50
  %v196 = vunpack.c.l.b16 %v51
  %v197 = vunpack.c.h.b16 %v51
  %v198 = vunpack.c.l.b16 %v52
  %v199 = vunpack.c.h.b16 %v52
  %v200 = vpack.c.b16 %v152, %v150
  %v201 = vpack.c.b16 %v153, %v151
  %v202 = vpack.c.b16 %v156, %v154
  %v203 = vpack.c.b16 %v157, %v155
  %v204 = vpack.c.b16 %v160, %v158
  %v205 = vpack.c.b16 %v161, %v159
  %v206 = vpack.c.b16 %v164, %v162
  %v207 = vpack.c.b16 %v165, %v163
  %v208 = vpack.c.b16 %v168, %v166
  %v209 = vpack.c.b16 %v169, %v167
  %v210 = vpack.c.b16 %v172, %v170
  %v211 = vpack.c.b16 %v173, %v171
  %v212 = vpack.c.b16 %v176, %v174
  %v213 = vpack.c.b16 %v177, %v175
  %v214 = vpack.c.b16 %v180, %v178
  %v215 = vpack.c.b16 %v181, %v179
  %v216 = vpack.c.b16 %v184, %v182
  %v217 = vpack.c.b16 %v185, %v183
  %v218 = vpack.c.b16 %v188, %v186
  %v219 = vpack.c.b16 %v189, %v187
  %v220 = vpack.c.b16 %v192, %v190
  %v221 = vpack.c.b16 %v193, %v191
  %v222 = vpack.c.b16 %v196, %v194
  %v223 = vpack.c.b16 %v197, %v195
  %v224 = vpack.c.b16 %v198, %v198
  %v225 = vpack.c.b16 %v199, %v199
  %vm250 = vcmask 588800
  %v252 = vsel %vm250, %v105, 0
  %v255 = vsel %vm250, %v107, 0
  %v258 = vsel %vm250, %v109, 0
  %v261 = vsel %vm250, %v111, 0
  %v264 = vsel %vm250, %v113, 0
  %v267 = vsel %vm250, %v115, 0
  %v270 = vsel %vm250, %v117, 0
  %vm272 = vcmask 1043456
  %v274 = vsel %vm272, %v224, 0
  %v277 = vsel %vm272, %v225, 0
  %279 = vmatprep.subr.bf16.mxu0 %v201
  %280 = vmatpush1.bf16.msra.mxu0 %v200
  %281 = vmatprep.subr.bf16.mxu0 %v203
  %282 = vmatpush1.bf16.msra.mxu0 %v202
  %283 = vmatprep.subr.bf16.mxu0 %v205
  %284 = vmatpush1.bf16.msra.mxu0 %v204
  %285 = vmatprep.subr.bf16.mxu0 %v207
  %286 = vmatpush1.bf16.msra.mxu0 %v206
  %287 = vmatprep.subr.bf16.mxu0 %v209
  %288 = vmatpush1.bf16.msra.mxu0 %v208
  %289 = vmatprep.subr.bf16.mxu0 %v211
  %290 = vmatpush1.bf16.msra.mxu0 %v210
  %291 = vmatprep.subr.bf16.mxu0 %v213
  %292 = vmatpush1.bf16.msra.mxu0 %v212
  %293 = vmatprep.subr.bf16.mxu0 %v215
  %294 = vmatpush1.bf16.msra.mxu0 %v214
  %295 = vmatprep.subr.bf16.mxu0 %v217
  %296 = vmatpush1.bf16.msra.mxu0 %v216
  %297 = vmatprep.subr.bf16.mxu0 %v219
  %298 = vmatpush1.bf16.msra.mxu0 %v218
  %299 = vmatprep.subr.bf16.mxu0 %v221
  %300 = vmatpush1.bf16.msra.mxu0 %v220
  %301 = vmatprep.subr.bf16.mxu0 %v223
  %302 = vmatpush1.bf16.msra.mxu0 %v222
  %303 = vmatprep.subr.bf16.mxu0 %v277
  %304 = vmatpush1.bf16.msra.mxu0 %v274
  %305 = vmatprep.subr.bf16.mxu0 0
  %306 = vmatpush1.bf16.msra.mxu0 0
  %307 = vmatprep.subr.bf16.mxu0 0
  %308 = vmatpush1.bf16.msra.mxu0 0
  %309 = vmatprep.subr.bf16.mxu0 0
  %310 = vmatpush1.bf16.msra.mxu0 0
  %311 = vmatprep.mubr.bf16.mxu0 %v252
  %312 = vmatmul.mubr.bf16.gmra.mrb[0].mxu0 %v104
  %v313 = vpop.f32.mrb[0].mxu0
  %v314 = vadd.f32 %v58, %v313
  %v315 = vpop.f32.mrb[0].mxu0
  %v316 = vadd.f32 %v62, %v315
  %v317 = vpop.f32.mrb[0].mxu0
  %v318 = vadd.f32 %v58, %v317
  %v319 = vpop.f32.mrb[0].mxu0
  %v320 = vadd.f32 %v62, %v319
  %321 = vmatprep.mubr.bf16.mxu0 %v255
  %322 = vmatmul.mubr.bf16.gmra.mrb[0].mxu0 %v106
  %v323 = vpop.f32.mrb[0].mxu0
  %v324 = vadd.f32 %v58, %v323
  %v325 = vpop.f32.mrb[0].mxu0
  %v326 = vadd.f32 %v62, %v325
  %v327 = vpop.f32.mrb[0].mxu0
  %v328 = vadd.f32 %v58, %v327
  %v329 = vpop.f32.mrb[0].mxu0
  %v330 = vadd.f32 %v62, %v329
  %331 = vmatprep.mubr.bf16.mxu0 %v258
  %332 = vmatmul.mubr.bf16.gmra.mrb[0].mxu0 %v108
  %v333 = vpop.f32.mrb[0].mxu0
  %v334 = vadd.f32 %v58, %v333
  %v335 = vpop.f32.mrb[0].mxu0
  %v336 = vadd.f32 %v62, %v335
  %v337 = vpop.f32.mrb[0].mxu0
  %v338 = vadd.f32 %v58, %v337
  %v339 = vpop.f32.mrb[0].mxu0
  %v340 = vadd.f32 %v62, %v339
  %341 = vmatprep.mubr.bf16.mxu0 %v261
  %342 = vmatmul.mubr.bf16.gmra.mrb[0].mxu0 %v110
  %v343 = vpop.f32.mrb[0].mxu0
  %v344 = vadd.f32 %v58, %v343
  %v345 = vpop.f32.mrb[0].mxu0
  %v346 = vadd.f32 %v62, %v345
  %v347 = vpop.f32.mrb[0].mxu0
  %v348 = vadd.f32 %v58, %v347
  %v349 = vpop.f32.mrb[0].mxu0
  %v350 = vadd.f32 %v62, %v349
  %351 = vmatprep.mubr.bf16.mxu0 %v264
  %352 = vmatmul.mubr.bf16.gmra.mrb[0].mxu0 %v112
  %v353 = vpop.f32.mrb[0].mxu0
  %v354 = vadd.f32 %v58, %v353
  %v355 = vpop.f32.mrb[0].mxu0
  %v356 = vadd.f32 %v62, %v355
  %v357 = vpop.f32.mrb[0].mxu0
  %v358 = vadd.f32 %v58, %v357
  %v359 = vpop.f32.mrb[0].mxu0
  %v360 = vadd.f32 %v62, %v359
  %361 = vmatprep.mubr.bf16.mxu0 %v267
  %362 = vmatmul.mubr.bf16.gmra.mrb[0].mxu0 %v114
  %v363 = vpop.f32.mrb[0].mxu0
  %v364 = vadd.f32 %v58, %v363
  %v365 = vpop.f32.mrb[0].mxu0
  %v366 = vadd.f32 %v62, %v365
  %v367 = vpop.f32.mrb[0].mxu0
  %v368 = vadd.f32 %v58, %v367
  %v369 = vpop.f32.mrb[0].mxu0
  %v370 = vadd.f32 %v62, %v369
  %371 = vmatprep.mubr.bf16.mxu0 %v270
  %372 = vmatmul.mubr.bf16.gmra.mrb[0].mxu0 %v116
  %v373 = vpop.f32.mrb[0].mxu0
  %v374 = vadd.f32 %v58, %v373
  %v375 = vpop.f32.mrb[0].mxu0
  %v376 = vadd.f32 %v62, %v375
  %v377 = vpop.f32.mrb[0].mxu0
  %v378 = vpop.f32.mrb[0].mxu0
  %379 = vdwg.mxu0
  %v380 = vmax.f32 %v314, 0.0
  %v381 = vmax.f32 %v316, 0.0
  %v382 = vmax.f32 %v318, 0.0
  %v383 = vmax.f32 %v320, 0.0
  %v384 = vmax.f32 %v324, 0.0
  %v385 = vmax.f32 %v326, 0.0
  %v386 = vmax.f32 %v328, 0.0
  %v387 = vmax.f32 %v330, 0.0
  %v388 = vmax.f32 %v334, 0.0
  %v389 = vmax.f32 %v336, 0.0
  %v390 = vmax.f32 %v338, 0.0
  %v391 = vmax.f32 %v340, 0.0
  %v392 = vmax.f32 %v344, 0.0
  %v393 = vmax.f32 %v346, 0.0
  %v394 = vmax.f32 %v348, 0.0
  %v395 = vmax.f32 %v350, 0.0
  %v396 = vmax.f32 %v354, 0.0
  %v397 = vmax.f32 %v356, 0.0
  %v398 = vmax.f32 %v358, 0.0
  %v399 = vmax.f32 %v360, 0.0
  %v400 = vmax.f32 %v364, 0.0
  %v401 = vmax.f32 %v366, 0.0
  %v402 = vmax.f32 %v368, 0.0
  %v403 = vmax.f32 %v370, 0.0
  %v404 = vmax.f32 %v374, 0.0
  %v405 = vmax.f32 %v376, 0.0
  %406 = vst [vmem:[%s3] sm:$0xff] %v380
  %vm407 = vcmask 523264
  %408 = vst.msk [vmem:[%s3 + $0x8] sm:$0xff] %vm407, %v381
  %409 = vst [vmem:[%s3 + $0x10] sm:$0xff] %v382
  %410 = vst.msk [vmem:[%s3 + $0x18] sm:$0xff] %vm407, %v383
  %411 = vst [vmem:[%s3 + $0x20] sm:$0xff] %v384
  %412 = vst.msk [vmem:[%s3 + $0x28] sm:$0xff] %vm407, %v385
  %413 = vst [vmem:[%s3 + $0x30] sm:$0xff] %v386
  %414 = vst.msk [vmem:[%s3 + $0x38] sm:$0xff] %vm407, %v387
  %415 = vst [vmem:[%s3 + $0x40] sm:$0xff] %v388
  %416 = vst.msk [vmem:[%s3 + $0x48] sm:$0xff] %vm407, %v389
  %417 = vst [vmem:[%s3 + $0x50] sm:$0xff] %v390
  %418 = vst.msk [vmem:[%s3 + $0x58] sm:$0xff] %vm407, %v391
  %419 = vst [vmem:[%s3 + $0x60] sm:$0xff] %v392
  %420 = vst.msk [vmem:[%s3 + $0x68] sm:$0xff] %vm407, %v393
  %421 = vst [vmem:[%s3 + $0x70] sm:$0xff] %v394
  %422 = vst.msk [vmem:[%s3 + $0x78] sm:$0xff] %vm407, %v395
  %423 = vst [vmem:[%s3 + $0x80] sm:$0xff] %v396
  %424 = vst.msk [vmem:[%s3 + $0x88] sm:$0xff] %vm407, %v397
  %425 = vst [vmem:[%s3 + $0x90] sm:$0xff] %v398
  %426 = vst.msk [vmem:[%s3 + $0x98] sm:$0xff] %vm407, %v399
  %427 = vst [vmem:[%s3 + $0xa0] sm:$0xff] %v400
  %428 = vst.msk [vmem:[%s3 + $0xa8] sm:$0xff] %vm407, %v401
  %429 = vst [vmem:[%s3 + $0xb0] sm:$0xff] %v402
  %430 = vst.msk [vmem:[%s3 + $0xb8] sm:$0xff] %vm407, %v403
  %431 = vst [vmem:[%s3 + $0xc0] sm:$0xff] %v404
  %432 = vst.msk [vmem:[%s3 + $0xc8] sm:$0xff] %vm407, %v405
  // Predicated region
  $region14: #{tpu_custom_call.1} parent=0 // pred_check
    _
  $region15: #{tpu_custom_call.1} parent=0 // pred_check_branch
    %434 = sbr.rel (0) target = $region17
  $region16: #{tpu_custom_call.1} parent=0 // pred_region
    _
  $region17: #{tpu_custom_call.1} parent=0 // pred_fallthru
    _
  // Predicated region
  $region18: #{tpu_custom_call.1} parent=0 // pred_check
    _
  $region19: #{tpu_custom_call.1} parent=0 // pred_check_branch
    %436 = sbr.rel (0) target = $region21
  $region20: #{tpu_custom_call.1} parent=0 // pred_region
    _
  $region21: #{tpu_custom_call.1} parent=0 // pred_fallthru
    _

</llo_original>
